<compile_context>
chip_gen: v7x
topology: tpu7x:2x2x1
jax: 0.10.0
libtpu: 0.0.40
codegen_flags: <defaults>
</compile_context>

<pallas_src>
import jax
import jax.numpy as jnp
from jax.experimental import pallas as pl
from jax.experimental.pallas import tpu as pltpu


def policy_kernel(x_ref, w1_ref, wd_ref, bd_ref, o_ref):
    # x:  (8, TB)   augmented inputs  [x0..x3, 1, 0, 0, 0] per column
    # w1: (128, 8)  [W1 | b1 | 0 0 0]          (resident)
    # wd: (1, 128)  (W2[0] - W2[1])            (resident)
    # bd: (1,) SMEM scalar = b2[0] - b2[1]
    # o:  (2, TB)   row 0 = P(action 0), row 1 = P(action 1)

    # ---- Linear(4,128) + bias + ReLU: one MXU pass (bias folded into K=8).
    h = jnp.maximum(
        jnp.dot(w1_ref[...], x_ref[...], preferred_element_type=jnp.float32),
        0.0,
    )                                                     # (128, TB) f32

    # ---- Linear(128,2) + Softmax collapsed to a logit-difference sigmoid:
    #   d  = (W2[0]-W2[1]) . h + (b2[0]-b2[1]);  p0 = sigmoid(d); p1 = 1-p0
    d = jnp.dot(wd_ref[...], h, preferred_element_type=jnp.float32) + bd_ref[0]
    p0 = 0.5 * jnp.tanh(0.5 * d) + 0.5                    # sigmoid on the EUP

    # Single lane-dense store of both probability rows.
    o_ref[...] = jnp.concatenate([p0, 1.0 - p0], axis=0)


def policy_forward(x, w1, b1, w2, b2, *, block_b=8192):
    """x: (B, 4); PyTorch-layout params: w1 (128,4), b1 (128,), w2 (2,128), b2 (2,).

    Returns softmax probabilities of shape (B, 2)."""
    assert block_b % 128 == 0
    B = x.shape[0]

    b_pad128 = ((B + 127) // 128) * 128          # batch rounded to lane width
    tb = min(block_b, b_pad128)                  # batch tile (multiple of 128)
    bp = ((b_pad128 + tb - 1) // tb) * tb        # padded batch, multiple of tb
    grid = (bp // tb,)

    # Lane-dense (features, batch) layout; zero-pad the batch (padded columns
    # produce finite garbage that is sliced off below).  Augment with a row of
    # ones (bias) and three zero rows so the layer-1 contraction dim is 8.
    x_t = jnp.pad(x.astype(jnp.float32).T, ((0, 0), (0, bp - B)))       # (4, bp)
    x_aug = jnp.concatenate(
        [x_t, jnp.ones((1, bp), jnp.float32), jnp.zeros((3, bp), jnp.float32)],
        axis=0,
    )                                                                    # (8, bp)

    w1_aug = jnp.concatenate(
        [w1.astype(jnp.float32),
         b1.astype(jnp.float32).reshape(128, 1),
         jnp.zeros((128, 3), jnp.float32)],
        axis=1,
    )                                                                    # (128, 8)
    wd = (w2[0] - w2[1]).astype(jnp.float32).reshape(1, 128)             # (1, 128)
    bd = (b2[0] - b2[1]).astype(jnp.float32).reshape(1)                  # (1,) SMEM

    out_t = pl.pallas_call(
        policy_kernel,
        out_shape=jax.ShapeDtypeStruct((2, bp), jnp.float32),
        grid=grid,
        in_specs=[
            pl.BlockSpec((8, tb), lambda i: (0, i)),          # x_aug, batch-tiled
            pl.BlockSpec((128, 8), lambda i: (0, 0)),         # W1|b1, resident
            pl.BlockSpec((1, 128), lambda i: (0, 0)),         # W2 row-diff, resident
            pl.BlockSpec(memory_space=pltpu.MemorySpace.SMEM),  # b2 diff (scalar)
        ],
        out_specs=pl.BlockSpec((2, tb), lambda i: (0, i)),    # lane-dense output
        # TODO(synk): on v7x, verify in the trace that the batch axis actually
        # shards across both TensorCores; switch to pltpu.CORE_PARALLEL if not.
        compiler_params=pltpu.CompilerParams(
            dimension_semantics=("parallel",)),
    )(x_aug, w1_aug, wd, bd)

    return out_t[:, :B].T                                    # back to (B, 2)


def init_params(key):
    # PyTorch nn.Linear default init: U(-1/sqrt(fan_in), 1/sqrt(fan_in)),
    # weights stored PyTorch-style as (out_features, in_features).
    k1, k2, k3, k4 = jax.random.split(key, 4)
    bound1 = 1.0 / jnp.sqrt(4.0)
    bound2 = 1.0 / jnp.sqrt(128.0)
    w1 = jax.random.uniform(k1, (128, 4), jnp.float32, -bound1, bound1)
    b1 = jax.random.uniform(k2, (128,), jnp.float32, -bound1, bound1)
    w2 = jax.random.uniform(k3, (2, 128), jnp.float32, -bound2, bound2)
    b2 = jax.random.uniform(k4, (2,), jnp.float32, -bound2, bound2)
    return w1, b1, w2, b2


def reference_forward(x, w1, b1, w2, b2):
    h = jnp.maximum(x @ w1.T + b1, 0.0)
    return jax.nn.softmax(h @ w2.T + b2, axis=-1)


if __name__ == "__main__":
    key = jax.random.PRNGKey(0)
    pkey, xkey = jax.random.split(key)
    w1, b1, w2, b2 = init_params(pkey)

    # Small batch of CartPole-style observations (batch=8, obs_dim=4).
    x = jax.random.normal(xkey, (8, 4), jnp.float32)

    out = jax.block_until_ready(policy_forward(x, w1, b1, w2, b2))

    ref = reference_forward(x, w1, b1, w2, b2)
    assert out.shape == (8, 2)
    assert jnp.allclose(out, ref, atol=2e-5, rtol=2e-5)
    assert jnp.allclose(jnp.sum(out, axis=-1), 1.0, atol=1e-6)

    print("KERNEL_OK")
</pallas_src>

<mosaic_0001>
module attributes {stable_mosaic.version = 11 : i64} {
  func.func @policy_kernel(%arg0: i32, %arg1: memref<8x128xf32, #tpu.memory_space<vmem>>, %arg2: memref<128x8xf32, #tpu.memory_space<vmem>>, %arg3: memref<1x128xf32, #tpu.memory_space<vmem>>, %arg4: memref<1xf32, #tpu.memory_space<smem>>, %arg5: memref<2x128xf32, #tpu.memory_space<vmem>>) attributes {dimension_semantics = [#tpu.dimension_semantics<parallel>], iteration_bounds = array<i64: 1>, scalar_prefetch = 0 : i64, scratch_operands = 0 : i64, tpu.core_type = #tpu.core_type<tc>, window_params = [{transform_indices = @transform_0, window_bounds = array<i64: 8, 128>}, {pipeline_mode = #tpu.pipeline_mode<synchronous>, transform_indices = @transform_1, window_bounds = array<i64: 128, 8>}, {pipeline_mode = #tpu.pipeline_mode<synchronous>, transform_indices = @transform_2, window_bounds = array<i64: 1, 128>}, {transform_indices = @transform_3, window_bounds = array<i64: 1>}, {transform_indices = @transform_4, window_bounds = array<i64: 2, 128>}]} {
    %c0 = arith.constant 0 : index
    %c0_0 = arith.constant 0 : index
    %0 = vector.load %arg2[%c0, %c0_0] : memref<128x8xf32, #tpu.memory_space<vmem>>, vector<128x8xf32>
    %c0_1 = arith.constant 0 : index
    %c0_2 = arith.constant 0 : index
    %1 = vector.load %arg1[%c0_1, %c0_2] : memref<8x128xf32, #tpu.memory_space<vmem>>, vector<8x128xf32>
    %cst = arith.constant dense<0.000000e+00> : vector<128x128xf32>
    %2 = tpu.matmul %0, %1, %cst {dimension_numbers = #tpu.dot_dimension_numbers<[1], [0], [0], [1], [0, 0, 1, 1], [], []>} : vector<128x8xf32>, vector<8x128xf32>, vector<128x128xf32> -> vector<128x128xf32>
    %cst_3 = arith.constant 0.000000e+00 : f32
    %3 = vector.broadcast %cst_3 : f32 to vector<128x128xf32>
    %4 = arith.maximumf %2, %3 : vector<128x128xf32>
    %c0_4 = arith.constant 0 : index
    %c0_5 = arith.constant 0 : index
    %5 = vector.load %arg3[%c0_4, %c0_5] : memref<1x128xf32, #tpu.memory_space<vmem>>, vector<1x128xf32>
    %cst_6 = arith.constant dense<0.000000e+00> : vector<1x128xf32>
    %6 = tpu.matmul %5, %4, %cst_6 {dimension_numbers = #tpu.dot_dimension_numbers<[1], [0], [0], [1], [0, 0, 1, 1], [], []>} : vector<1x128xf32>, vector<128x128xf32>, vector<1x128xf32> -> vector<1x128xf32>
    %c0_7 = arith.constant 0 : index
    %7 = memref.load %arg4[%c0_7] : memref<1xf32, #tpu.memory_space<smem>>
    %8 = vector.broadcast %7 : f32 to vector<1x128xf32>
    %9 = arith.addf %6, %8 : vector<1x128xf32>
    %cst_8 = arith.constant 5.000000e-01 : f32
    %10 = vector.broadcast %cst_8 : f32 to vector<1x128xf32>
    %11 = arith.mulf %10, %9 : vector<1x128xf32>
    %12 = math.tanh %11 : vector<1x128xf32>
    %cst_9 = arith.constant 5.000000e-01 : f32
    %13 = vector.broadcast %cst_9 : f32 to vector<1x128xf32>
    %14 = arith.mulf %13, %12 : vector<1x128xf32>
    %cst_10 = arith.constant 5.000000e-01 : f32
    %15 = vector.broadcast %cst_10 : f32 to vector<1x128xf32>
    %16 = arith.addf %14, %15 : vector<1x128xf32>
    %cst_11 = arith.constant 1.000000e+00 : f32
    %17 = vector.broadcast %cst_11 : f32 to vector<1x128xf32>
    %18 = arith.subf %17, %16 : vector<1x128xf32>
    %19 = tpu.concatenate %16, %18 in 0 : vector<1x128xf32>, vector<1x128xf32> -> vector<2x128xf32>
    %c0_12 = arith.constant 0 : index
    %c0_13 = arith.constant 0 : index
    %20 = vector.load %arg5[%c0_12, %c0_13] : memref<2x128xf32, #tpu.memory_space<vmem>>, vector<2x128xf32>
    tpu.vector_store %arg5[%c0_12, %c0_13], %19 {strides = array<i32>} : memref<2x128xf32, #tpu.memory_space<vmem>>, vector<2x128xf32>,
    return
  }
  func.func @transform_0(%arg0: i32) -> (i32, i32) {
    %c0_i32 = arith.constant 0 : i32
    %c0_i32_0 = arith.constant 0 : i32
    return %c0_i32, %arg0 : i32, i32
  }
  func.func @transform_1(%arg0: i32) -> (i32, i32) {
    %c0_i32 = arith.constant 0 : i32
    %c0_i32_0 = arith.constant 0 : i32
    %c0_i32_1 = arith.constant 0 : i32
    return %c0_i32, %c0_i32_0 : i32, i32
  }
  func.func @transform_2(%arg0: i32) -> (i32, i32) {
    %c0_i32 = arith.constant 0 : i32
    %c0_i32_0 = arith.constant 0 : i32
    %c0_i32_1 = arith.constant 0 : i32
    return %c0_i32, %c0_i32_0 : i32, i32
  }
  func.func @transform_3(%arg0: i32) -> i32 {
    %c0_i32 = arith.constant 0 : i32
    %c0_i32_0 = arith.constant 0 : i32
    return %c0_i32 : i32
  }
  func.func @transform_4(%arg0: i32) -> (i32, i32) {
    %c0_i32 = arith.constant 0 : i32
    %c0_i32_0 = arith.constant 0 : i32
    return %c0_i32, %arg0 : i32, i32
  }
}

</mosaic_0001>

<llo_original>
// kernel: tpu_custom_call.1
$region0: #{tpu_custom_call.1}
  #allocation0 [shape = 'u32[]', space=smem, size = 0x4, offset = 0x4, fixed_abs, tag = 'smem constant byte address 0x4 - core index']
  #allocation1 [shape = 'u32[144,128]{1,0:T(1,128)}', space=vmem, size = 0x12000, scoped, tag = 'internal scratch']
  #allocation2 [shape = 'f32[1]{0:T(128)S(6)}', space=smem, size = 0x200, scoped, tag = 'scoped memory for tpu_custom_call.1']
  %s0 = inlined_call_operand.vmem [shape: f32[8,128], index: 0, kind: input, shape index: {}]
  %s1 = inlined_call_operand.vmem [shape: f32[128,8], index: 1, kind: input, shape index: {}]
  %s2 = inlined_call_operand.vmem [shape: f32[1,128], index: 2, kind: input, shape index: {}]
  %s3 = inlined_call_operand.<no memory space> [shape: f32[1], index: 3, kind: input, shape index: {}]
  %s4 = inlined_call_operand.hbm [shape: f32[2,128], index: 4, kind: output, shape index: {}]
  %s5 = sld [smem:[#allocation0]]
  $region26: #{tpu_custom_call.1} parent=0
    _
  %s7 = ssub.s32 1, %s5
  %s8 = scalar_select 0, %s7, %s5
  %9 = sst [smem:[#allocation2]] %s3
  $region1: #{tpu_custom_call.1} parent=0
    #allocation3 [shape = 'u8[1024]{0}', space=vmem, size = 0x400, scoped, tag = 'output window, operand 0, single buffered']
    #allocation4 [shape = 's32[1]{0}', space=sflag, size = 0x4, scoped, tag = 'scoped memory for tpu_custom_call.1']
    %10 = vsyncpa [#allocation4], 0
    // Predicated region
    $region2: #{tpu_custom_call.1} parent=1 // pred_check
      _
    $region3: #{tpu_custom_call.1} parent=1 // pred_check_branch
      %12 = sbr.rel (0) target = $region5
    $region4: #{tpu_custom_call.1} parent=1 // pred_region
      _
    $region5: #{tpu_custom_call.1} parent=1 // pred_fallthru
      _
    // Predicated region
    $region6: #{tpu_custom_call.1} parent=1 // pred_check
      _
    $region7: #{tpu_custom_call.1} parent=1 // pred_check_branch
      %14 = sbr.rel (0) target = $region9
    $region8: #{tpu_custom_call.1} parent=1 // pred_region
      _
    $region9: #{tpu_custom_call.1} parent=1 // pred_fallthru
      _
    // Predicated region
    $region10: #{tpu_custom_call.1} parent=1 // pred_check
      _
    $region11: #{tpu_custom_call.1} parent=1 // pred_check_branch
      %16 = sbr.rel (0) target = $region13
    $region12: #{tpu_custom_call.1} parent=1 // pred_region
      _
    $region13: #{tpu_custom_call.1} parent=1 // pred_fallthru
      _
    // Predicated region
    $region14: #{tpu_custom_call.1} parent=1 // pred_check
      _
    $region15: #{tpu_custom_call.1} parent=1 // pred_check_branch
      %18 = sbr.rel (0) target = $region17
    $region16: #{tpu_custom_call.1} parent=1 // pred_region
      _
    $region17: #{tpu_custom_call.1} parent=1 // pred_fallthru
      _
    %v19 = vld [vmem:[%s1] sm:$0xff]
    %v20 = vld [vmem:[%s1 + $0x8] sm:$0xff]
    %v21 = vld [vmem:[%s1 + $0x10] sm:$0xff]
    %v22 = vld [vmem:[%s1 + $0x18] sm:$0xff]
    %v23 = vld [vmem:[%s1 + $0x20] sm:$0xff]
    %v24 = vld [vmem:[%s1 + $0x28] sm:$0xff]
    %v25 = vld [vmem:[%s1 + $0x30] sm:$0xff]
    %v26 = vld [vmem:[%s1 + $0x38] sm:$0xff]
    %v27 = vld [vmem:[%s1 + $0x40] sm:$0xff]
    %v28 = vld [vmem:[%s1 + $0x48] sm:$0xff]
    %v29 = vld [vmem:[%s1 + $0x50] sm:$0xff]
    %v30 = vld [vmem:[%s1 + $0x58] sm:$0xff]
    %v31 = vld [vmem:[%s1 + $0x60] sm:$0xff]
    %v32 = vld [vmem:[%s1 + $0x68] sm:$0xff]
    %v33 = vld [vmem:[%s1 + $0x70] sm:$0xff]
    %v34 = vld [vmem:[%s1 + $0x78] sm:$0xff]
    %v35 = vld [vmem:[%s0] sm:$0xff]
    %vm36 = vcmask 64512
    %v38 = vsel %vm36, %v19, 0
    %v41 = vsel %vm36, %v20, 0
    %v44 = vsel %vm36, %v21, 0
    %v47 = vsel %vm36, %v22, 0
    %v50 = vsel %vm36, %v23, 0
    %v53 = vsel %vm36, %v24, 0
    %v56 = vsel %vm36, %v25, 0
    %v59 = vsel %vm36, %v26, 0
    %v62 = vsel %vm36, %v27, 0
    %v65 = vsel %vm36, %v28, 0
    %v68 = vsel %vm36, %v29, 0
    %v71 = vsel %vm36, %v30, 0
    %v74 = vsel %vm36, %v31, 0
    %v77 = vsel %vm36, %v32, 0
    %v80 = vsel %vm36, %v33, 0
    %v83 = vsel %vm36, %v34, 0
    %85 = vmatprep.subr.mxu0 0.0
    %86 = vmatpush1.msra.mxu0 %v35
    %87 = vmatprep.subr.mxu0 0.0
    %88 = vmatpush1.msra.mxu0 0.0
    %89 = vmatprep.subr.mxu0 0.0
    %90 = vmatpush1.msra.mxu0 0.0
    %91 = vmatprep.subr.mxu0 0.0
    %92 = vmatpush1.msra.mxu0 0.0
    %93 = vmatprep.subr.mxu0 0.0
    %94 = vmatpush1.msra.mxu0 0.0
    %95 = vmatprep.subr.mxu0 0.0
    %96 = vmatpush1.msra.mxu0 0.0
    %97 = vmatprep.subr.mxu0 0.0
    %98 = vmatpush1.msra.mxu0 0.0
    %99 = vmatprep.subr.mxu0 0.0
    %100 = vmatpush1.msra.mxu0 0.0
    %101 = vmatprep.subr.mxu0 0.0
    %102 = vmatpush1.msra.mxu0 0.0
    %103 = vmatprep.subr.mxu0 0.0
    %104 = vmatpush1.msra.mxu0 0.0
    %105 = vmatprep.subr.mxu0 0.0
    %106 = vmatpush1.msra.mxu0 0.0
    %107 = vmatprep.subr.mxu0 0.0
    %108 = vmatpush1.msra.mxu0 0.0
    %109 = vmatprep.subr.mxu0 0.0
    %110 = vmatpush1.msra.mxu0 0.0
    %111 = vmatprep.subr.mxu0 0.0
    %112 = vmatpush1.msra.mxu0 0.0
    %113 = vmatprep.subr.mxu0 0.0
    %114 = vmatpush1.msra.mxu0 0.0
    %115 = vmatprep.subr.mxu0 0.0
    %116 = vmatpush1.msra.mxu0 0.0
    %117 = vmatprep.subr.mxu0 0.0
    %118 = vmatpush1.msra.mxu0 0.0
    %119 = vmatprep.subr.mxu0 0.0
    %120 = vmatpush1.msra.mxu0 0.0
    %121 = vmatprep.subr.mxu0 0.0
    %122 = vmatpush1.msra.mxu0 0.0
    %123 = vmatprep.subr.mxu0 0.0
    %124 = vmatpush1.msra.mxu0 0.0
    %125 = vmatprep.subr.mxu0 0.0
    %126 = vmatpush1.msra.mxu0 0.0
    %127 = vmatprep.subr.mxu0 0.0
    %128 = vmatpush1.msra.mxu0 0.0
    %129 = vmatprep.subr.mxu0 0.0
    %130 = vmatpush1.msra.mxu0 0.0
    %131 = vmatprep.subr.mxu0 0.0
    %132 = vmatpush1.msra.mxu0 0.0
    %133 = vmatprep.subr.mxu0 0.0
    %134 = vmatpush1.msra.mxu0 0.0
    %135 = vmatprep.subr.mxu0 0.0
    %136 = vmatpush1.msra.mxu0 0.0
    %137 = vmatprep.subr.mxu0 0.0
    %138 = vmatpush1.msra.mxu0 0.0
    %139 = vmatprep.subr.mxu0 0.0
    %140 = vmatpush1.msra.mxu0 0.0
    %141 = vmatprep.subr.mxu0 0.0
    %142 = vmatpush1.msra.mxu0 0.0
    %143 = vmatprep.subr.mxu0 0.0
    %144 = vmatpush1.msra.mxu0 0.0
    %145 = vmatprep.subr.mxu0 0.0
    %146 = vmatpush1.msra.mxu0 0.0
    %147 = vmatprep.subr.mxu0 0.0
    %148 = vmatpush1.msra.mxu0 0.0
    %149 = vmatprep.mubr.f32.mxu0 0.0
    %150 = vmatmul.mubr.f32.gmra.mrb[0].mxu0 %v38
    %v151 = vpop.f32.mrb[0].mxu0
    %v152 = vadd.f32 0.0, %v151
    %v153 = vpop.f32.mrb[0].mxu0
    %154 = vmatprep.mubr.f32.mxu0 0.0
    %155 = vmatmul.mubr.f32.gmra.mrb[0].mxu0 %v41
    %v156 = vpop.f32.mrb[0].mxu0
    %v157 = vadd.f32 0.0, %v156
    %v158 = vpop.f32.mrb[0].mxu0
    %159 = vmatprep.mubr.f32.mxu0 0.0
    %160 = vmatmul.mubr.f32.gmra.mrb[0].mxu0 %v44
    %v161 = vpop.f32.mrb[0].mxu0
    %v162 = vadd.f32 0.0, %v161
    %v163 = vpop.f32.mrb[0].mxu0
    %164 = vmatprep.mubr.f32.mxu0 0.0
    %165 = vmatmul.mubr.f32.gmra.mrb[0].mxu0 %v47
    %v166 = vpop.f32.mrb[0].mxu0
    %v167 = vadd.f32 0.0, %v166
    %v168 = vpop.f32.mrb[0].mxu0
    %169 = vmatprep.mubr.f32.mxu0 0.0
    %170 = vmatmul.mubr.f32.gmra.mrb[0].mxu0 %v50
    %v171 = vpop.f32.mrb[0].mxu0
    %v172 = vadd.f32 0.0, %v171
    %v173 = vpop.f32.mrb[0].mxu0
    %174 = vmatprep.mubr.f32.mxu0 0.0
    %175 = vmatmul.mubr.f32.gmra.mrb[0].mxu0 %v53
    %v176 = vpop.f32.mrb[0].mxu0
    %v177 = vadd.f32 0.0, %v176
    %v178 = vpop.f32.mrb[0].mxu0
    %179 = vmatprep.mubr.f32.mxu0 0.0
    %180 = vmatmul.mubr.f32.gmra.mrb[0].mxu0 %v56
    %v181 = vpop.f32.mrb[0].mxu0
    %v182 = vadd.f32 0.0, %v181
    %v183 = vpop.f32.mrb[0].mxu0
    %184 = vmatprep.mubr.f32.mxu0 0.0
    %185 = vmatmul.mubr.f32.gmra.mrb[0].mxu0 %v59
    %v186 = vpop.f32.mrb[0].mxu0
    %v187 = vadd.f32 0.0, %v186
    %v188 = vpop.f32.mrb[0].mxu0
    %189 = vmatprep.mubr.f32.mxu0 0.0
    %190 = vmatmul.mubr.f32.gmra.mrb[0].mxu0 %v62
    %v191 = vpop.f32.mrb[0].mxu0
    %v192 = vadd.f32 0.0, %v191
    %v193 = vpop.f32.mrb[0].mxu0
    %194 = vmatprep.mubr.f32.mxu0 0.0
    %195 = vmatmul.mubr.f32.gmra.mrb[0].mxu0 %v65
    %v196 = vpop.f32.mrb[0].mxu0
    %v197 = vadd.f32 0.0, %v196
    %v198 = vpop.f32.mrb[0].mxu0
    %199 = vmatprep.mubr.f32.mxu0 0.0
    %200 = vmatmul.mubr.f32.gmra.mrb[0].mxu0 %v68
    %v201 = vpop.f32.mrb[0].mxu0
    %v202 = vadd.f32 0.0, %v201
    %v203 = vpop.f32.mrb[0].mxu0
    %204 = vmatprep.mubr.f32.mxu0 0.0
    %205 = vmatmul.mubr.f32.gmra.mrb[0].mxu0 %v71
    %v206 = vpop.f32.mrb[0].mxu0
    %v207 = vadd.f32 0.0, %v206
    %v208 = vpop.f32.mrb[0].mxu0
    %209 = vmatprep.mubr.f32.mxu0 0.0
    %210 = vmatmul.mubr.f32.gmra.mrb[0].mxu0 %v74
    %v211 = vpop.f32.mrb[0].mxu0
    %v212 = vadd.f32 0.0, %v211
    %v213 = vpop.f32.mrb[0].mxu0
    %214 = vmatprep.mubr.f32.mxu0 0.0
    %215 = vmatmul.mubr.f32.gmra.mrb[0].mxu0 %v77
    %v216 = vpop.f32.mrb[0].mxu0
    %v217 = vadd.f32 0.0, %v216
    %v218 = vpop.f32.mrb[0].mxu0
    %219 = vmatprep.mubr.f32.mxu0 0.0
    %220 = vmatmul.mubr.f32.gmra.mrb[0].mxu0 %v80
    %v221 = vpop.f32.mrb[0].mxu0
    %v222 = vadd.f32 0.0, %v221
    %v223 = vpop.f32.mrb[0].mxu0
    %224 = vmatprep.mubr.f32.mxu0 0.0
    %225 = vmatmul.mubr.f32.gmra.mrb[0].mxu0 %v83
    %v226 = vpop.f32.mrb[0].mxu0
    %v227 = vadd.f32 0.0, %v226
    %v228 = vpop.f32.mrb[0].mxu0
    %229 = vdwg.mxu0
    %v230 = vmax.f32 %v152, 0.0
    %v231 = vmax.f32 %v157, 0.0
    %v232 = vmax.f32 %v162, 0.0
    %v233 = vmax.f32 %v167, 0.0
    %v234 = vmax.f32 %v172, 0.0
    %v235 = vmax.f32 %v177, 0.0
    %v236 = vmax.f32 %v182, 0.0
    %v237 = vmax.f32 %v187, 0.0
    %v238 = vmax.f32 %v192, 0.0
    %v239 = vmax.f32 %v197, 0.0
    %v240 = vmax.f32 %v202, 0.0
    %v241 = vmax.f32 %v207, 0.0
    %v242 = vmax.f32 %v212, 0.0
    %v243 = vmax.f32 %v217, 0.0
    %v244 = vmax.f32 %v222, 0.0
    %v245 = vmax.f32 %v227, 0.0
    %v246 = vld [vmem:[%s2] sm:$0x1]
    %s247 = sld [smem:[#allocation2]]
    %v248 = vstv %s247
    %249 = vmatprep.subr.mxu0 0.0
    %250 = vmatpush1.msra.mxu0 %v230
    %251 = vmatprep.subr.mxu0 0.0
    %252 = vmatpush1.msra.mxu0 %v231
    %253 = vmatprep.subr.mxu0 0.0
    %254 = vmatpush1.msra.mxu0 %v232
    %255 = vmatprep.subr.mxu0 0.0
    %256 = vmatpush1.msra.mxu0 %v233
    %257 = vmatprep.subr.mxu0 0.0
    %258 = vmatpush1.msra.mxu0 %v234
    %259 = vmatprep.subr.mxu0 0.0
    %260 = vmatpush1.msra.mxu0 %v235
    %261 = vmatprep.subr.mxu0 0.0
    %262 = vmatpush1.msra.mxu0 %v236
    %263 = vmatprep.subr.mxu0 0.0
    %264 = vmatpush1.msra.mxu0 %v237
    %265 = vmatprep.subr.mxu0 0.0
    %266 = vmatpush1.msra.mxu0 %v238
    %267 = vmatprep.subr.mxu0 0.0
    %268 = vmatpush1.msra.mxu0 %v239
    %269 = vmatprep.subr.mxu0 0.0
    %270 = vmatpush1.msra.mxu0 %v240
    %271 = vmatprep.subr.mxu0 0.0
    %272 = vmatpush1.msra.mxu0 %v241
    %273 = vmatprep.subr.mxu0 0.0
    %274 = vmatpush1.msra.mxu0 %v242
    %275 = vmatprep.subr.mxu0 0.0
    %276 = vmatpush1.msra.mxu0 %v243
    %277 = vmatprep.subr.mxu0 0.0
    %278 = vmatpush1.msra.mxu0 %v244
    %279 = vmatprep.subr.mxu0 0.0
    %280 = vmatpush1.msra.mxu0 %v245
    %281 = vmatprep.subr.mxu0 0.0
    %282 = vmatpush1.msra.mxu0 0.0
    %283 = vmatprep.subr.mxu0 0.0
    %284 = vmatpush1.msra.mxu0 0.0
    %285 = vmatprep.subr.mxu0 0.0
    %286 = vmatpush1.msra.mxu0 0.0
    %287 = vmatprep.subr.mxu0 0.0
    %288 = vmatpush1.msra.mxu0 0.0
    %289 = vmatprep.subr.mxu0 0.0
    %290 = vmatpush1.msra.mxu0 0.0
    %291 = vmatprep.subr.mxu0 0.0
    %292 = vmatpush1.msra.mxu0 0.0
    %293 = vmatprep.subr.mxu0 0.0
    %294 = vmatpush1.msra.mxu0 0.0
    %295 = vmatprep.subr.mxu0 0.0
    %296 = vmatpush1.msra.mxu0 0.0
    %297 = vmatprep.subr.mxu0 0.0
    %298 = vmatpush1.msra.mxu0 0.0
    %299 = vmatprep.subr.mxu0 0.0
    %300 = vmatpush1.msra.mxu0 0.0
    %301 = vmatprep.subr.mxu0 0.0
    %302 = vmatpush1.msra.mxu0 0.0
    %303 = vmatprep.subr.mxu0 0.0
    %304 = vmatpush1.msra.mxu0 0.0
    %305 = vmatprep.subr.mxu0 0.0
    %306 = vmatpush1.msra.mxu0 0.0
    %307 = vmatprep.subr.mxu0 0.0
    %308 = vmatpush1.msra.mxu0 0.0
    %309 = vmatprep.subr.mxu0 0.0
    %310 = vmatpush1.msra.mxu0 0.0
    %311 = vmatprep.subr.mxu0 0.0
    %312 = vmatpush1.msra.mxu0 0.0
    %313 = vmatprep.mubr.f32.mxu0 0.0
    %314 = vmatmul.mubr.f32.gmra.mrb[0].mxu0 %v246
    %v315 = vpop.f32.mrb[0].mxu0
    %v316 = vadd.f32 %v248, %v315
    %v317 = vpop.f32.mrb[0].mxu0
    %318 = vdwg.mxu0
    %v319 = vmul.f32 %v316, 0.5
    %v320 = vtanh.pop %v319
    %v321 = vmul.f32 %v320, 0.5
    %v322 = vadd.f32 %v321, 0.5
    %v323 = vsub.f32 1.0, %v322
    %v325 = vrot.slane %v323, 7
    %vm327 = vcmask 1040384
    %v328 = vsel %vm327, %v322, %v325
    %329 = vst [vmem:[#allocation3] sm:$0x3] %v328
    // Predicated region
    $region18: #{tpu_custom_call.1} parent=1 // pred_check
      _
    $region19: #{tpu_custom_call.1} parent=1 // pred_check_branch
      %331 = sbr.rel (0) target = $region21
    $region20: #{tpu_custom_call.1} parent=1 // pred_region
      %s333 = ssub.s32 32, 32
      %334 = vsyncadd [#allocation4], %s333
      %s336 = sshll.u32 [#allocation3], 4
      %s337 = int_to_ptr.vmem [resolvable:$true] %s336
      %339 = dma.vmem_to_hbm [thread:$0]  %s337, 32, %s4, [#allocation4]
    $region21: #{tpu_custom_call.1} parent=1 // pred_fallthru
      _
    // Predicated region
    $region22: #{tpu_custom_call.1} parent=1 // pred_check
      _
    $region23: #{tpu_custom_call.1} parent=1 // pred_check_branch
      %341 = sbr.rel (0) target = $region25
    $region24: #{tpu_custom_call.1} parent=1 // pred_region
      %342 = dma.done [#allocation4], 32
    $region25: #{tpu_custom_call.1} parent=1 // pred_fallthru
      _
    %343 = vsyncpa [#allocation4], 1

</llo_original>
